<compile_context>
chip_gen: v7x
topology: tpu7x:2x2x1
jax: 0.10.0
libtpu: 0.0.40
codegen_flags: <defaults>
</compile_context>

<pallas_src>
import jax
import jax.numpy as jnp
from jax.experimental import pallas as pl
from jax.experimental.pallas import tpu as pltpu

_LANE = 128


def _selfweight_kernel(x_ref, w_ref, b_ref, o_ref):
    # x_ref : (TM, D)     in VMEM (streamed per grid step)
    # w_ref : (D,  O_pad) in VMEM (constant index -> resident across grid)
    # b_ref : (1,  O_pad) in VMEM (constant index -> resident across grid)
    # o_ref : (TM, O_pad) in VMEM (lane-dense: O_pad % 128 == 0)
    y = jnp.dot(x_ref[...], w_ref[...], preferred_element_type=jnp.float32)
    y = y + b_ref[...]                      # f32 bias broadcast over rows
    o_ref[...] = jnp.tanh(y).astype(o_ref.dtype)


def selfweight_forward(x, w, b, *, node_emb_size, out_size,
                       block_b=512, use_bf16_mxu=False):
    """x: (B, D); w: (D, 3*node_emb_size*out_size); b: (3*node_emb_size*out_size,)."""
    B, D = x.shape
    O = w.shape[1]
    assert O == 3 * node_emb_size * out_size
    out_dtype = x.dtype

    # --- Lane-dense output: pad O up to a multiple of 128 with zero columns.
    O_pad = max(_LANE, pl.cdiv(O, _LANE) * _LANE)
    if O_pad != O:
        w = jnp.pad(w, ((0, 0), (0, O_pad - O)))
        b = jnp.pad(b, (0, O_pad - O))
    b2d = b.reshape(1, O_pad).astype(jnp.float32)

    # --- Optional bf16 MXU inputs (f32 accumulate + f32 epilogue in-kernel).
    if use_bf16_mxu:
        x = x.astype(jnp.bfloat16)
        w = w.astype(jnp.bfloat16)

    # --- Batch tiling: one block if B is small, otherwise block_b-row tiles
    # (multiple of 8) with zero-padded rows that are sliced off afterwards.
    if B <= block_b:
        tm = B
        B_pad = B
    else:
        tm = block_b
        B_pad = pl.cdiv(B, tm) * tm
    if B_pad != B:
        x = jnp.pad(x, ((0, B_pad - B), (0, 0)))

    grid = (B_pad // tm,)

    out = pl.pallas_call(
        _selfweight_kernel,
        out_shape=jax.ShapeDtypeStruct((B_pad, O_pad), out_dtype),
        grid_spec=pltpu.PrefetchScalarGridSpec(
            num_scalar_prefetch=0,
            grid=grid,
            in_specs=[
                pl.BlockSpec((tm, D), lambda i: (i, 0)),        # streamed x
                pl.BlockSpec((D, O_pad), lambda i: (0, 0)),     # resident W
                pl.BlockSpec((1, O_pad), lambda i: (0, 0)),     # resident b
            ],
            out_specs=pl.BlockSpec((tm, O_pad), lambda i: (i, 0)),
        ),
        compiler_params=pltpu.CompilerParams(
            # Batch tiles are independent -> let v7x megacore shard them.
            dimension_semantics=("parallel",)),
    )(x, w, b2d)

    # Drop padding, then the reshape is pure metadata (matches torch.reshape).
    out = out[:B, :O]
    return out.reshape(B, 3, out_size, node_emb_size)


def reference_forward(x, w, b, *, node_emb_size, out_size):
    """Pure-JAX reference mirroring the PyTorch module."""
    y = jnp.tanh(x @ w + b)
    return y.reshape(x.shape[0], 3, out_size, node_emb_size)


if __name__ == "__main__":
    topo_emb_size = 32
    node_emb_size = 8
    out_size = 4
    output_size = 3 * node_emb_size * out_size  # 96

    key = jax.random.PRNGKey(0)
    kx, kw, kb, kx2 = jax.random.split(key, 4)

    # Deterministic parameter init (nn.Linear-style uniform(-1/sqrt(D), 1/sqrt(D))).
    bound = 1.0 / jnp.sqrt(jnp.float32(topo_emb_size))
    w = jax.random.uniform(kw, (topo_emb_size, output_size),
                           minval=-bound, maxval=bound, dtype=jnp.float32)
    b = jax.random.uniform(kb, (output_size,),
                           minval=-bound, maxval=bound, dtype=jnp.float32)

    # --- Small demo shape (module-consistent): B=2 -> single-block path.
    B = 2
    x = jax.random.normal(kx, (B, topo_emb_size), dtype=jnp.float32)
    out = selfweight_forward(x, w, b,
                             node_emb_size=node_emb_size, out_size=out_size)
    out = jax.block_until_ready(out)
    ref = reference_forward(x, w, b,
                            node_emb_size=node_emb_size, out_size=out_size)
    assert out.shape == (B, 3, out_size, node_emb_size)
    assert jnp.allclose(out, ref, atol=1e-5, rtol=1e-5)

    # --- Larger batch: exercises batch tiling + row padding (1040 -> 5 tiles
    # of 256) with a multi-point parallel grid; still cheap.
    B2 = 1040
    x2 = jax.random.normal(kx2, (B2, topo_emb_size), dtype=jnp.float32)
    out2 = selfweight_forward(x2, w, b, node_emb_size=node_emb_size,
                              out_size=out_size, block_b=256)
    out2 = jax.block_until_ready(out2)
    ref2 = reference_forward(x2, w, b,
                             node_emb_size=node_emb_size, out_size=out_size)
    assert out2.shape == (B2, 3, out_size, node_emb_size)
    assert jnp.allclose(out2, ref2, atol=1e-4, rtol=1e-4)

    print("KERNEL_OK")
</pallas_src>

<mosaic_0001>
module attributes {stable_mosaic.version = 11 : i64} {
  func.func @_selfweight_kernel(%arg0: i32, %arg1: memref<2x32xf32, #tpu.memory_space<vmem>>, %arg2: memref<32x128xf32, #tpu.memory_space<vmem>>, %arg3: memref<1x128xf32, #tpu.memory_space<vmem>>, %arg4: memref<2x128xf32, #tpu.memory_space<vmem>>) attributes {dimension_semantics = [#tpu.dimension_semantics<parallel>], iteration_bounds = array<i64: 1>, scalar_prefetch = 0 : i64, scratch_operands = 0 : i64, tpu.core_type = #tpu.core_type<tc>, window_params = [{transform_indices = @transform_0, window_bounds = array<i64: 2, 32>}, {pipeline_mode = #tpu.pipeline_mode<synchronous>, transform_indices = @transform_1, window_bounds = array<i64: 32, 128>}, {pipeline_mode = #tpu.pipeline_mode<synchronous>, transform_indices = @transform_2, window_bounds = array<i64: 1, 128>}, {transform_indices = @transform_3, window_bounds = array<i64: 2, 128>}]} {
    %c0 = arith.constant 0 : index
    %c0_0 = arith.constant 0 : index
    %0 = vector.load %arg1[%c0, %c0_0] : memref<2x32xf32, #tpu.memory_space<vmem>>, vector<2x32xf32>
    %c0_1 = arith.constant 0 : index
    %c0_2 = arith.constant 0 : index
    %1 = vector.load %arg2[%c0_1, %c0_2] : memref<32x128xf32, #tpu.memory_space<vmem>>, vector<32x128xf32>
    %cst = arith.constant dense<0.000000e+00> : vector<2x128xf32>
    %2 = tpu.matmul %0, %1, %cst {dimension_numbers = #tpu.dot_dimension_numbers<[1], [0], [0], [1], [0, 0, 1, 1], [], []>} : vector<2x32xf32>, vector<32x128xf32>, vector<2x128xf32> -> vector<2x128xf32>
    %c0_3 = arith.constant 0 : index
    %c0_4 = arith.constant 0 : index
    %3 = vector.load %arg3[%c0_3, %c0_4] : memref<1x128xf32, #tpu.memory_space<vmem>>, vector<1x128xf32>
    %4 = vector.broadcast %3 : vector<1x128xf32> to vector<2x128xf32>
    %5 = arith.addf %2, %4 : vector<2x128xf32>
    %6 = math.tanh %5 : vector<2x128xf32>
    %c0_5 = arith.constant 0 : index
    %c0_6 = arith.constant 0 : index
    %7 = vector.load %arg4[%c0_5, %c0_6] : memref<2x128xf32, #tpu.memory_space<vmem>>, vector<2x128xf32>
    tpu.vector_store %arg4[%c0_5, %c0_6], %6 {strides = array<i32>} : memref<2x128xf32, #tpu.memory_space<vmem>>, vector<2x128xf32>,
    return
  }
  func.func @transform_0(%arg0: i32) -> (i32, i32) {
    %c0_i32 = arith.constant 0 : i32
    %c0_i32_0 = arith.constant 0 : i32
    return %arg0, %c0_i32 : i32, i32
  }
  func.func @transform_1(%arg0: i32) -> (i32, i32) {
    %c0_i32 = arith.constant 0 : i32
    %c0_i32_0 = arith.constant 0 : i32
    %c0_i32_1 = arith.constant 0 : i32
    return %c0_i32, %c0_i32_0 : i32, i32
  }
  func.func @transform_2(%arg0: i32) -> (i32, i32) {
    %c0_i32 = arith.constant 0 : i32
    %c0_i32_0 = arith.constant 0 : i32
    %c0_i32_1 = arith.constant 0 : i32
    return %c0_i32, %c0_i32_0 : i32, i32
  }
  func.func @transform_3(%arg0: i32) -> (i32, i32) {
    %c0_i32 = arith.constant 0 : i32
    %c0_i32_0 = arith.constant 0 : i32
    return %arg0, %c0_i32 : i32, i32
  }
}

</mosaic_0001>

<llo_original>
// kernel: tpu_custom_call.1
$region0: #{tpu_custom_call.1}
  #allocation0 [shape = 'u32[]', space=smem, size = 0x4, offset = 0x4, fixed_abs, tag = 'smem constant byte address 0x4 - core index']
  #allocation1 [shape = 'u32[144,128]{1,0:T(1,128)}', space=vmem, size = 0x12000, scoped, tag = 'internal scratch']
  %s0 = inlined_call_operand.hbm [shape: f32[2,32], index: 0, kind: input, shape index: {}]
  %s1 = inlined_call_operand.hbm [shape: f32[32,128], index: 1, kind: input, shape index: {}]
  %s2 = inlined_call_operand.vmem [shape: f32[1,128], index: 2, kind: input, shape index: {}]
  %s3 = inlined_call_operand.hbm [shape: f32[2,128], index: 3, kind: output, shape index: {}]
  %s4 = sld [smem:[#allocation0]]
  $region30: #{tpu_custom_call.1} parent=0
    _
  %s6 = ssub.s32 1, %s4
  %s7 = scalar_select 0, %s6, %s4
  $region1: #{tpu_custom_call.1} parent=0
    #allocation2 [shape = 'u8[1024]{0}', space=vmem, size = 0x400, scoped, tag = 'input window, operand 0, single buffered']
    #allocation3 [shape = 's32[1]{0}', space=sflag, size = 0x4, scoped, tag = 'scoped memory for tpu_custom_call.1']
    #allocation4 [shape = 's32[1]{0}', space=sflag, size = 0x4, scoped, tag = 'scoped memory for tpu_custom_call.1']
    #allocation5 [shape = 'u8[16384]{0}', space=vmem, size = 0x4000, scoped, tag = 'input window, operand 1, single buffered']
    #allocation6 [shape = 's32[1]{0}', space=sflag, size = 0x4, scoped, tag = 'scoped memory for tpu_custom_call.1']
    #allocation7 [shape = 'u8[1024]{0}', space=vmem, size = 0x400, scoped, tag = 'output window, operand 0, single buffered']
    %8 = vsyncpa [#allocation3], 0
    %9 = vsyncpa [#allocation6], 0
    %10 = vsyncpa [#allocation4], 0
    // Predicated region
    $region2: #{tpu_custom_call.1} parent=1 // pred_check
      _
    $region3: #{tpu_custom_call.1} parent=1 // pred_check_branch
      %12 = sbr.rel (0) target = $region5
    $region4: #{tpu_custom_call.1} parent=1 // pred_region
      %s14 = ssub.s32 32, 32
      %15 = vsyncadd [#allocation3], %s14
      %s17 = sshll.u32 [#allocation2], 4
      %s18 = int_to_ptr.vmem [resolvable:$true] %s17
      %20 = dma.hbm_to_vmem [thread:$0]  %s0, 32, %s18, [#allocation3]
    $region5: #{tpu_custom_call.1} parent=1 // pred_fallthru
      _
    // Predicated region
    $region6: #{tpu_custom_call.1} parent=1 // pred_check
      _
    $region7: #{tpu_custom_call.1} parent=1 // pred_check_branch
      %22 = sbr.rel (0) target = $region9
    $region8: #{tpu_custom_call.1} parent=1 // pred_region
      %s24 = ssub.s32 512, 512
      %25 = vsyncadd [#allocation6], %s24
      %s26 = sshll.u32 [#allocation5], 4
      %s27 = int_to_ptr.vmem [resolvable:$true] %s26
      %32 = dma.hbm_to_vmem [thread:$0]  %s1, 512, %s27, [#allocation6], 128, 128, 8
    $region9: #{tpu_custom_call.1} parent=1 // pred_fallthru
      _
    // Predicated region
    $region10: #{tpu_custom_call.1} parent=1 // pred_check
      _
    $region11: #{tpu_custom_call.1} parent=1 // pred_check_branch
      %34 = sbr.rel (0) target = $region13
    $region12: #{tpu_custom_call.1} parent=1 // pred_region
      _
    $region13: #{tpu_custom_call.1} parent=1 // pred_fallthru
      _
    // Predicated region
    $region14: #{tpu_custom_call.1} parent=1 // pred_check
      _
    $region15: #{tpu_custom_call.1} parent=1 // pred_check_branch
      %36 = sbr.rel (0) target = $region17
    $region16: #{tpu_custom_call.1} parent=1 // pred_region
      %37 = dma.done [#allocation3], 32
    $region17: #{tpu_custom_call.1} parent=1 // pred_fallthru
      _
    // Predicated region
    $region18: #{tpu_custom_call.1} parent=1 // pred_check
      _
    $region19: #{tpu_custom_call.1} parent=1 // pred_check_branch
      %39 = sbr.rel (0) target = $region21
    $region20: #{tpu_custom_call.1} parent=1 // pred_region
      %40 = dma.done [#allocation6], 512
    $region21: #{tpu_custom_call.1} parent=1 // pred_fallthru
      _
    %v41 = vld [vmem:[#allocation2] sm:$0x3]
    %v42 = vld [vmem:[#allocation5] sm:$0xff]
    %v43 = vld [vmem:[#allocation5 + $0x8] sm:$0xff]
    %v44 = vld [vmem:[#allocation5 + $0x10] sm:$0xff]
    %v45 = vld [vmem:[#allocation5 + $0x18] sm:$0xff]
    %v46 = vld [vmem:[%s2] sm:$0x1]
    %v48 = vlaneseq
    %v49 = vshrl.u32 %v48, 7
    %v50 = vsub.s32 0, %v49
    %v51 = vrot.slane %v46, %v50
    %vm53 = vcmask 261120
    %v55 = vsel %vm53, %v41, 0
    %57 = vmatprep.subr.mxu0 0.0
    %58 = vmatpush1.msra.mxu0 %v42
    %59 = vmatprep.subr.mxu0 0.0
    %60 = vmatpush1.msra.mxu0 %v43
    %61 = vmatprep.subr.mxu0 0.0
    %62 = vmatpush1.msra.mxu0 %v44
    %63 = vmatprep.subr.mxu0 0.0
    %64 = vmatpush1.msra.mxu0 %v45
    %65 = vmatprep.subr.mxu0 0.0
    %66 = vmatpush1.msra.mxu0 0.0
    %67 = vmatprep.subr.mxu0 0.0
    %68 = vmatpush1.msra.mxu0 0.0
    %69 = vmatprep.subr.mxu0 0.0
    %70 = vmatpush1.msra.mxu0 0.0
    %71 = vmatprep.subr.mxu0 0.0
    %72 = vmatpush1.msra.mxu0 0.0
    %73 = vmatprep.subr.mxu0 0.0
    %74 = vmatpush1.msra.mxu0 0.0
    %75 = vmatprep.subr.mxu0 0.0
    %76 = vmatpush1.msra.mxu0 0.0
    %77 = vmatprep.subr.mxu0 0.0
    %78 = vmatpush1.msra.mxu0 0.0
    %79 = vmatprep.subr.mxu0 0.0
    %80 = vmatpush1.msra.mxu0 0.0
    %81 = vmatprep.subr.mxu0 0.0
    %82 = vmatpush1.msra.mxu0 0.0
    %83 = vmatprep.subr.mxu0 0.0
    %84 = vmatpush1.msra.mxu0 0.0
    %85 = vmatprep.subr.mxu0 0.0
    %86 = vmatpush1.msra.mxu0 0.0
    %87 = vmatprep.subr.mxu0 0.0
    %88 = vmatpush1.msra.mxu0 0.0
    %89 = vmatprep.subr.mxu0 0.0
    %90 = vmatpush1.msra.mxu0 0.0
    %91 = vmatprep.subr.mxu0 0.0
    %92 = vmatpush1.msra.mxu0 0.0
    %93 = vmatprep.subr.mxu0 0.0
    %94 = vmatpush1.msra.mxu0 0.0
    %95 = vmatprep.subr.mxu0 0.0
    %96 = vmatpush1.msra.mxu0 0.0
    %97 = vmatprep.subr.mxu0 0.0
    %98 = vmatpush1.msra.mxu0 0.0
    %99 = vmatprep.subr.mxu0 0.0
    %100 = vmatpush1.msra.mxu0 0.0
    %101 = vmatprep.subr.mxu0 0.0
    %102 = vmatpush1.msra.mxu0 0.0
    %103 = vmatprep.subr.mxu0 0.0
    %104 = vmatpush1.msra.mxu0 0.0
    %105 = vmatprep.subr.mxu0 0.0
    %106 = vmatpush1.msra.mxu0 0.0
    %107 = vmatprep.subr.mxu0 0.0
    %108 = vmatpush1.msra.mxu0 0.0
    %109 = vmatprep.subr.mxu0 0.0
    %110 = vmatpush1.msra.mxu0 0.0
    %111 = vmatprep.subr.mxu0 0.0
    %112 = vmatpush1.msra.mxu0 0.0
    %113 = vmatprep.subr.mxu0 0.0
    %114 = vmatpush1.msra.mxu0 0.0
    %115 = vmatprep.subr.mxu0 0.0
    %116 = vmatpush1.msra.mxu0 0.0
    %117 = vmatprep.subr.mxu0 0.0
    %118 = vmatpush1.msra.mxu0 0.0
    %119 = vmatprep.subr.mxu0 0.0
    %120 = vmatpush1.msra.mxu0 0.0
    %121 = vmatprep.mubr.f32.mxu0 0.0
    %122 = vmatmul.mubr.f32.gmra.mrb[0].mxu0 %v55
    %v123 = vpop.f32.mrb[0].mxu0
    %v124 = vadd.f32 %v51, %v123
    %v125 = vpop.f32.mrb[0].mxu0
    %126 = vdwg.mxu0
    %v127 = vtanh.pop %v124
    %128 = vst [vmem:[#allocation7] sm:$0x3] %v127
    // Predicated region
    $region22: #{tpu_custom_call.1} parent=1 // pred_check
      _
    $region23: #{tpu_custom_call.1} parent=1 // pred_check_branch
      %130 = sbr.rel (0) target = $region25
    $region24: #{tpu_custom_call.1} parent=1 // pred_region
      %s132 = ssub.s32 32, 32
      %133 = vsyncadd [#allocation4], %s132
      %s135 = sshll.u32 [#allocation7], 4
      %s136 = int_to_ptr.vmem [resolvable:$true] %s135
      %138 = dma.vmem_to_hbm [thread:$0]  %s136, 32, %s3, [#allocation4]
    $region25: #{tpu_custom_call.1} parent=1 // pred_fallthru
      _
    // Predicated region
    $region26: #{tpu_custom_call.1} parent=1 // pred_check
      _
    $region27: #{tpu_custom_call.1} parent=1 // pred_check_branch
      %140 = sbr.rel (0) target = $region29
    $region28: #{tpu_custom_call.1} parent=1 // pred_region
      %141 = dma.done [#allocation4], 32
    $region29: #{tpu_custom_call.1} parent=1 // pred_fallthru
      _
    %142 = vsyncpa [#allocation3], 1
    %143 = vsyncpa [#allocation6], 1
    %144 = vsyncpa [#allocation4], 1

</llo_original>
